<compile_context>
chip_gen: v6e
topology: v6e:2x2x1
jax: 0.10.0
libtpu: 0.0.40
codegen_flags: <defaults>
</compile_context>

<pallas_src>
import math

import jax
import jax.numpy as jnp
from jax.experimental import pallas as pl
from jax.experimental.pallas import tpu as pltpu


def scalar_mix_kernel(coeff_ref, *refs):
    """One grid step of the weighted sum.

    coeff_ref : SMEM (K,) f32  = gamma * softmax(w), computed once in XLA.
    refs[:-1] : K VMEM tiles, each (tile_m, L), one per mixture input.
    refs[-1]  : output VMEM tile (tile_m, L).
    """
    o_ref = refs[-1]
    x_refs = refs[:-1]

    # f32 scalar coeff * tile promotes to f32, so accumulation is in f32.
    acc = coeff_ref[0] * x_refs[0][...]
    for k in range(1, len(x_refs)):
        acc = acc + coeff_ref[k] * x_refs[k][...]
    o_ref[...] = acc.astype(o_ref.dtype)


def _round_up(x, m):
    return ((x + m - 1) // m) * m


def _pick_lane_layout(N, sub):
    """Choose a lane-dense (M, L) layout covering the leading `main` elements.

    Returns (L, main): L is a multiple of 128 and main = (N // L) * L is the
    number of elements routed through the Pallas kernel.  The remaining
    N - main elements (< L) are handled by a tiny XLA epilogue.  Prefers the
    largest L that still leaves M >= sub so sublanes stay fully populated.
    """
    best_divisor = None
    for cand in (4096, 2048, 1024, 512, 256, 128):
        if N % cand == 0:
            if best_divisor is None:
                best_divisor = cand            # largest exact divisor
            if N // cand >= sub:               # keep sublanes populated
                return cand, N
    if best_divisor is not None:               # tiny exact multiple of 128
        return best_divisor, N
    # N is not a multiple of 128: lane-dense main chunk + small tail.
    for cand in (1024, 512, 256, 128):
        if N // cand >= sub:
            return cand, (N // cand) * cand
    if N >= 128:
        return 128, (N // 128) * 128
    return 0, 0                                # whole array is "tail"


def scalar_mix(tensors, w, gamma, *, vmem_budget_bytes=24 * 1024 * 1024):
    """Pallas ScalarMix.

    tensors : list of K arrays, all the same shape (>= 2-D) and dtype.
    w       : (K,) float32 scalar parameters.
    gamma   : scalar or (1,) float32.
    Returns : array with the same shape/dtype as the inputs.
    """
    K = len(tensors)
    if K == 0:
        raise ValueError("scalar_mix needs at least one tensor")
    shape = tensors[0].shape
    dtype = tensors[0].dtype
    for t in tensors:
        if t.shape != shape or t.dtype != dtype:
            raise ValueError("all mixed tensors must share shape and dtype")
    w = jnp.asarray(w, jnp.float32).reshape(-1)
    if w.shape[0] != K:
        raise ValueError(f"{K} tensors passed but w has {w.shape[0]} entries")
    gamma = jnp.asarray(gamma, jnp.float32).reshape(())   # accepts () or (1,)

    N = math.prod(shape)
    itemsize = jnp.dtype(dtype).itemsize
    sub = 16 if dtype == jnp.bfloat16 else 8              # sublane granule

    # --- hoist softmax + gamma: K scalars, essentially free in XLA ---
    coeffs = (gamma * jax.nn.softmax(w, axis=0)).astype(jnp.float32)

    flats = [t.reshape(-1) for t in tensors]               # metadata-only

    L, main = _pick_lane_layout(N, sub)

    if main == 0:
        # Degenerate tiny input (< 128 elements): plain XLA weighted sum.
        stacked = jnp.stack([f.astype(jnp.float32) for f in flats], axis=0)
        out = jnp.tensordot(coeffs, stacked, axes=1).astype(dtype)
        return out.reshape(shape)

    M = main // L

    # --- tile sizing: 2 bufs x (K+1) streams x tile_m x L x bytes <= budget,
    #     cdiv grid so the ragged last block is just masked (elementwise-safe).
    cap = vmem_budget_bytes // (2 * (K + 1) * L * itemsize)
    cap = max(sub, (cap // sub) * sub)
    if M <= sub:
        tile_m = M                              # single block == full array
    else:
        # At least 2 grid steps so both v7x TensorCores get work.
        two_way = _round_up(pl.cdiv(M, 2), sub)
        tile_m = max(sub, min(cap, two_way))
    grid = (pl.cdiv(M, tile_m),)

    blk = pl.BlockSpec((tile_m, L), lambda i: (i, 0))

    # Scoped-VMEM limit derived from the actual double-buffered footprint
    # (+25% headroom), floored at 32 MiB (v5e scoped default is only 16 MiB).
    footprint = 2 * (K + 1) * tile_m * L * itemsize
    vmem_limit = max(int(footprint * 1.25) + (1 << 20), 32 * 1024 * 1024)

    xs = [(f if main == N else f[:main]).reshape(M, L) for f in flats]

    out_main = pl.pallas_call(
        scalar_mix_kernel,
        out_shape=jax.ShapeDtypeStruct((M, L), dtype),
        grid=grid,
        in_specs=[pl.BlockSpec(memory_space=pltpu.MemorySpace.SMEM)]  # coeffs
                 + [blk] * K,                                         # K inputs
        out_specs=blk,
        compiler_params=pltpu.CompilerParams(
            dimension_semantics=("parallel",),
            vmem_limit_bytes=vmem_limit,
        ),
    )(coeffs, *xs)

    out_flat = out_main.reshape(-1)
    if main < N:
        # Small tail (< L elements): plain XLA weighted sum, negligible cost.
        tail = jnp.stack([f[main:].astype(jnp.float32) for f in flats], axis=0)
        out_tail = jnp.tensordot(coeffs, tail, axes=1).astype(dtype)
        out_flat = jnp.concatenate([out_flat, out_tail])
    return out_flat.reshape(shape)


def scalar_mix_ref(tensors, w, gamma):
    """Pure-JAX reference (mirrors the PyTorch forward)."""
    s = jax.nn.softmax(jnp.asarray(w, jnp.float32), axis=0)
    out = sum(s[k] * t.astype(jnp.float32) for k, t in enumerate(tensors))
    out = jnp.asarray(gamma, jnp.float32).reshape(()) * out
    return out.astype(tensors[0].dtype)


if __name__ == "__main__":
    key = jax.random.PRNGKey(0)

    def make_case(case_key, K, shape, dtype=jnp.float32):
        keys = jax.random.split(case_key, K)
        ts = [jax.random.normal(keys[k], shape, dtype=dtype) for k in range(K)]
        w = jnp.arange(K, dtype=jnp.float32) * 0.1 - 0.15   # (K,)
        gamma = jnp.array([1.25], dtype=jnp.float32)        # (1,)
        return ts, w, gamma

    cases = [
        (4, (2, 8, 32)),     # small BERT-like mix, N is an exact multiple of 128
        (4, (4, 100, 256)),  # multi-step cdiv grid with masked ragged last block
        (3, (3, 7, 37)),     # N % 128 != 0 -> kernel main chunk + tiny XLA tail
    ]
    for K, shape in cases:
        key, case_key = jax.random.split(key)
        tensors, w, gamma = make_case(case_key, K, shape)
        out = jax.block_until_ready(scalar_mix(tensors, w, gamma))
        ref = scalar_mix_ref(tensors, w, gamma)
        assert out.shape == shape and out.dtype == tensors[0].dtype
        assert jnp.allclose(out, ref, atol=1e-5, rtol=1e-5), f"mismatch for {shape}"

    print("KERNEL_OK")
</pallas_src>

<mosaic_0001>
module attributes {stable_mosaic.version = 11 : i64} {
  func.func @scalar_mix_kernel(%arg0: i32, %arg1: memref<4xf32, #tpu.memory_space<smem>>, %arg2: memref<1x512xf32, #tpu.memory_space<vmem>>, %arg3: memref<1x512xf32, #tpu.memory_space<vmem>>, %arg4: memref<1x512xf32, #tpu.memory_space<vmem>>, %arg5: memref<1x512xf32, #tpu.memory_space<vmem>>, %arg6: memref<1x512xf32, #tpu.memory_space<vmem>>) attributes {dimension_semantics = [#tpu.dimension_semantics<parallel>], iteration_bounds = array<i64: 1>, scalar_prefetch = 0 : i64, scratch_operands = 0 : i64, tpu.core_type = #tpu.core_type<tc>, window_params = [{transform_indices = @transform_0, window_bounds = array<i64: 4>}, {transform_indices = @transform_1, window_bounds = array<i64: 1, 512>}, {transform_indices = @transform_2, window_bounds = array<i64: 1, 512>}, {transform_indices = @transform_3, window_bounds = array<i64: 1, 512>}, {transform_indices = @transform_4, window_bounds = array<i64: 1, 512>}, {transform_indices = @transform_5, window_bounds = array<i64: 1, 512>}]} {
    %c0 = arith.constant 0 : index
    %0 = memref.load %arg1[%c0] : memref<4xf32, #tpu.memory_space<smem>>
    %c0_0 = arith.constant 0 : index
    %c0_1 = arith.constant 0 : index
    %1 = vector.load %arg2[%c0_0, %c0_1] : memref<1x512xf32, #tpu.memory_space<vmem>>, vector<1x512xf32>
    %2 = vector.broadcast %0 : f32 to vector<1x512xf32>
    %3 = arith.mulf %2, %1 : vector<1x512xf32>
    %c1 = arith.constant 1 : index
    %4 = memref.load %arg1[%c1] : memref<4xf32, #tpu.memory_space<smem>>
    %c0_2 = arith.constant 0 : index
    %c0_3 = arith.constant 0 : index
    %5 = vector.load %arg3[%c0_2, %c0_3] : memref<1x512xf32, #tpu.memory_space<vmem>>, vector<1x512xf32>
    %6 = vector.broadcast %4 : f32 to vector<1x512xf32>
    %7 = arith.mulf %6, %5 : vector<1x512xf32>
    %8 = arith.addf %3, %7 : vector<1x512xf32>
    %c2 = arith.constant 2 : index
    %9 = memref.load %arg1[%c2] : memref<4xf32, #tpu.memory_space<smem>>
    %c0_4 = arith.constant 0 : index
    %c0_5 = arith.constant 0 : index
    %10 = vector.load %arg4[%c0_4, %c0_5] : memref<1x512xf32, #tpu.memory_space<vmem>>, vector<1x512xf32>
    %11 = vector.broadcast %9 : f32 to vector<1x512xf32>
    %12 = arith.mulf %11, %10 : vector<1x512xf32>
    %13 = arith.addf %8, %12 : vector<1x512xf32>
    %c3 = arith.constant 3 : index
    %14 = memref.load %arg1[%c3] : memref<4xf32, #tpu.memory_space<smem>>
    %c0_6 = arith.constant 0 : index
    %c0_7 = arith.constant 0 : index
    %15 = vector.load %arg5[%c0_6, %c0_7] : memref<1x512xf32, #tpu.memory_space<vmem>>, vector<1x512xf32>
    %16 = vector.broadcast %14 : f32 to vector<1x512xf32>
    %17 = arith.mulf %16, %15 : vector<1x512xf32>
    %18 = arith.addf %13, %17 : vector<1x512xf32>
    %c0_8 = arith.constant 0 : index
    %c0_9 = arith.constant 0 : index
    %19 = vector.load %arg6[%c0_8, %c0_9] : memref<1x512xf32, #tpu.memory_space<vmem>>, vector<1x512xf32>
    tpu.vector_store %arg6[%c0_8, %c0_9], %18 {strides = array<i32>} : memref<1x512xf32, #tpu.memory_space<vmem>>, vector<1x512xf32>,
    return
  }
  func.func @transform_0(%arg0: i32) -> i32 {
    %c0_i32 = arith.constant 0 : i32
    %c0_i32_0 = arith.constant 0 : i32
    return %c0_i32 : i32
  }
  func.func @transform_1(%arg0: i32) -> (i32, i32) {
    %c0_i32 = arith.constant 0 : i32
    %c0_i32_0 = arith.constant 0 : i32
    return %arg0, %c0_i32 : i32, i32
  }
  func.func @transform_2(%arg0: i32) -> (i32, i32) {
    %c0_i32 = arith.constant 0 : i32
    %c0_i32_0 = arith.constant 0 : i32
    return %arg0, %c0_i32 : i32, i32
  }
  func.func @transform_3(%arg0: i32) -> (i32, i32) {
    %c0_i32 = arith.constant 0 : i32
    %c0_i32_0 = arith.constant 0 : i32
    return %arg0, %c0_i32 : i32, i32
  }
  func.func @transform_4(%arg0: i32) -> (i32, i32) {
    %c0_i32 = arith.constant 0 : i32
    %c0_i32_0 = arith.constant 0 : i32
    return %arg0, %c0_i32 : i32, i32
  }
  func.func @transform_5(%arg0: i32) -> (i32, i32) {
    %c0_i32 = arith.constant 0 : i32
    %c0_i32_0 = arith.constant 0 : i32
    return %arg0, %c0_i32 : i32, i32
  }
}

</mosaic_0001>

<llo_original>
// kernel: tpu_custom_call.1
$region0: #{tpu_custom_call.1}
  #allocation0 [shape = 'u32[]', space=smem, size = 0x4, offset = 0x4, fixed_abs, tag = 'smem constant byte address 0x4 - core index']
  #allocation1 [shape = 'u32[144,128]{1,0:T(1,128)}', space=vmem, size = 0x12000, scoped, tag = 'internal scratch']
  %s0 = inlined_call_operand.hbm [shape: f32[4], index: 0, kind: input, shape index: {}]
  %s1 = inlined_call_operand.hbm [shape: f32[1,512], index: 1, kind: input, shape index: {}]
  %s2 = inlined_call_operand.hbm [shape: f32[1,512], index: 2, kind: input, shape index: {}]
  %s3 = inlined_call_operand.vmem [shape: f32[1,512], index: 3, kind: input, shape index: {}]
  %s4 = inlined_call_operand.hbm [shape: f32[1,512], index: 4, kind: input, shape index: {}]
  %s5 = inlined_call_operand.hbm [shape: f32[1,512], index: 5, kind: output, shape index: {}]
  %s6 = sld [smem:[#allocation0]]
  $region46: #{tpu_custom_call.1} parent=0
    _
  %s8 = ssub.s32 1, %s6
  %s9 = scalar_select 0, %s8, %s6
  $region1: #{tpu_custom_call.1} parent=0
    #allocation2 [shape = 'u8[512]{0}', space=smem, size = 0x200, scoped, tag = 'input window, operand 0, single buffered']
    #allocation3 [shape = 's32[1]{0}', space=sflag, size = 0x4, scoped, tag = 'scoped memory for tpu_custom_call.1']
    #allocation4 [shape = 's32[1]{0}', space=sflag, size = 0x4, scoped, tag = 'scoped memory for tpu_custom_call.1']
    #allocation5 [shape = 's32[1]{0}', space=sflag, size = 0x4, scoped, tag = 'scoped memory for tpu_custom_call.1']
    #allocation6 [shape = 'u8[2048]{0}', space=vmem, size = 0x800, scoped, tag = 'input window, operand 1, single buffered']
    #allocation7 [shape = 'u8[2048]{0}', space=vmem, size = 0x800, scoped, tag = 'input window, operand 2, single buffered']
    #allocation8 [shape = 's32[1]{0}', space=sflag, size = 0x4, scoped, tag = 'scoped memory for tpu_custom_call.1']
    #allocation9 [shape = 'u8[2048]{0}', space=vmem, size = 0x800, scoped, tag = 'input window, operand 4, single buffered']
    #allocation10 [shape = 'u8[2048]{0}', space=vmem, size = 0x800, scoped, tag = 'output window, operand 0, single buffered']
    %10 = vsyncpa [#allocation5], 0
    %11 = vsyncpa [#allocation3], 0
    %12 = vsyncpa [#allocation8], 0
    %13 = vsyncpa [#allocation4], 0
    // Predicated region
    $region2: #{tpu_custom_call.1} parent=1 // pred_check
      _
    $region3: #{tpu_custom_call.1} parent=1 // pred_check_branch
      %15 = sbr.rel (0) target = $region5
    $region4: #{tpu_custom_call.1} parent=1 // pred_region
      %s17 = ssub.s32 16, 16
      %18 = vsyncadd [#allocation5], %s17
      %21 = dma.hbm_to_smem %s0, 16, [#allocation2], [#allocation5]
    $region5: #{tpu_custom_call.1} parent=1 // pred_fallthru
      _
    // Predicated region
    $region6: #{tpu_custom_call.1} parent=1 // pred_check
      _
    $region7: #{tpu_custom_call.1} parent=1 // pred_check_branch
      %23 = sbr.rel (0) target = $region9
    $region8: #{tpu_custom_call.1} parent=1 // pred_region
      %s25 = ssub.s32 64, 64
      %26 = vsyncadd [#allocation3], %s25
      %s28 = sshll.u32 [#allocation6], 4
      %s29 = int_to_ptr.vmem [resolvable:$true] %s28
      %31 = dma.hbm_to_vmem [thread:$0]  %s1, 64, %s29, [#allocation3]
    $region9: #{tpu_custom_call.1} parent=1 // pred_fallthru
      _
    // Predicated region
    $region10: #{tpu_custom_call.1} parent=1 // pred_check
      _
    $region11: #{tpu_custom_call.1} parent=1 // pred_check_branch
      %33 = sbr.rel (0) target = $region13
    $region12: #{tpu_custom_call.1} parent=1 // pred_region
      %s35 = ssub.s32 64, 64
      %36 = vsyncadd [#allocation8], %s35
      %s38 = sshll.u32 [#allocation7], 4
      %s39 = int_to_ptr.vmem [resolvable:$true] %s38
      %41 = dma.hbm_to_vmem [thread:$0]  %s2, 64, %s39, [#allocation8]
    $region13: #{tpu_custom_call.1} parent=1 // pred_fallthru
      _
    // Predicated region
    $region14: #{tpu_custom_call.1} parent=1 // pred_check
      _
    $region15: #{tpu_custom_call.1} parent=1 // pred_check_branch
      %43 = sbr.rel (0) target = $region17
    $region16: #{tpu_custom_call.1} parent=1 // pred_region
      _
    $region17: #{tpu_custom_call.1} parent=1 // pred_fallthru
      _
    // Predicated region
    $region18: #{tpu_custom_call.1} parent=1 // pred_check
      _
    $region19: #{tpu_custom_call.1} parent=1 // pred_check_branch
      %45 = sbr.rel (0) target = $region21
    $region20: #{tpu_custom_call.1} parent=1 // pred_region
      %s47 = ssub.s32 64, 64
      %48 = vsyncadd [#allocation8], %s47
      %s50 = sshll.u32 [#allocation9], 4
      %s51 = int_to_ptr.vmem [resolvable:$true] %s50
      %53 = dma.hbm_to_vmem [thread:$0]  %s4, 64, %s51, [#allocation8]
    $region21: #{tpu_custom_call.1} parent=1 // pred_fallthru
      _
    // Predicated region
    $region22: #{tpu_custom_call.1} parent=1 // pred_check
      _
    $region23: #{tpu_custom_call.1} parent=1 // pred_check_branch
      %55 = sbr.rel (0) target = $region25
    $region24: #{tpu_custom_call.1} parent=1 // pred_region
      %56 = dma.done [#allocation5], 16
    $region25: #{tpu_custom_call.1} parent=1 // pred_fallthru
      _
    // Predicated region
    $region26: #{tpu_custom_call.1} parent=1 // pred_check
      _
    $region27: #{tpu_custom_call.1} parent=1 // pred_check_branch
      %58 = sbr.rel (0) target = $region29
    $region28: #{tpu_custom_call.1} parent=1 // pred_region
      %59 = dma.done [#allocation3], 64
    $region29: #{tpu_custom_call.1} parent=1 // pred_fallthru
      _
    // Predicated region
    $region30: #{tpu_custom_call.1} parent=1 // pred_check
      _
    $region31: #{tpu_custom_call.1} parent=1 // pred_check_branch
      %61 = sbr.rel (0) target = $region33
    $region32: #{tpu_custom_call.1} parent=1 // pred_region
      %62 = dma.done [#allocation8], 64
    $region33: #{tpu_custom_call.1} parent=1 // pred_fallthru
      _
    // Predicated region
    $region34: #{tpu_custom_call.1} parent=1 // pred_check
      _
    $region35: #{tpu_custom_call.1} parent=1 // pred_check_branch
      %64 = sbr.rel (0) target = $region37
    $region36: #{tpu_custom_call.1} parent=1 // pred_region
      %65 = dma.done [#allocation8], 64
    $region37: #{tpu_custom_call.1} parent=1 // pred_fallthru
      _
    %66 = sfence
    %s67 = sld [smem:[#allocation2]]
    %v68 = vld [vmem:[#allocation6] sm:$0xf]
    %v69 = vstv %s67
    %v70 = vmul.f32 %v69, %v68
    %s71 = sld [smem:[#allocation2 + $0x1]]
    %v72 = vld [vmem:[#allocation7] sm:$0xf]
    %v73 = vstv %s71
    %v74 = vmul.f32 %v73, %v72
    %v75 = vadd.f32 %v70, %v74
    %s76 = sld [smem:[#allocation2 + $0x2]]
    %v77 = vld [vmem:[%s3] sm:$0xf]
    %v78 = vstv %s76
    %v79 = vmul.f32 %v78, %v77
    %v80 = vadd.f32 %v75, %v79
    %s81 = sld [smem:[#allocation2 + $0x3]]
    %v82 = vld [vmem:[#allocation9] sm:$0xf]
    %v83 = vstv %s81
    %v84 = vmul.f32 %v83, %v82
    %v85 = vadd.f32 %v80, %v84
    %v86 = vlaneseq
    %vm87 = vcmp.ge.s32.totalorder %v86, 0
    %vm88 = vcmp.lt.s32.totalorder %v86, 512
    %vm89 = vmand %vm87, %vm88
    %90 = vst.msk [vmem:[#allocation10] sm:$0xf] %vm89, %v85
    // Predicated region
    $region38: #{tpu_custom_call.1} parent=1 // pred_check
      _
    $region39: #{tpu_custom_call.1} parent=1 // pred_check_branch
      %92 = sbr.rel (0) target = $region41
    $region40: #{tpu_custom_call.1} parent=1 // pred_region
      %s94 = ssub.s32 64, 64
      %95 = vsyncadd [#allocation4], %s94
      %s97 = sshll.u32 [#allocation10], 4
      %s98 = int_to_ptr.vmem [resolvable:$true] %s97
      %100 = dma.vmem_to_hbm [thread:$0]  %s98, 64, %s5, [#allocation4]
    $region41: #{tpu_custom_call.1} parent=1 // pred_fallthru
      _
    // Predicated region
    $region42: #{tpu_custom_call.1} parent=1 // pred_check
      _
    $region43: #{tpu_custom_call.1} parent=1 // pred_check_branch
      %102 = sbr.rel (0) target = $region45
    $region44: #{tpu_custom_call.1} parent=1 // pred_region
      %103 = dma.done [#allocation4], 64
    $region45: #{tpu_custom_call.1} parent=1 // pred_fallthru
      _
    %104 = vsyncpa [#allocation3], 1
    %105 = vsyncpa [#allocation8], 1
    %106 = vsyncpa [#allocation4], 1
    %107 = vsyncpa [#allocation5], 1

</llo_original>
